<compile_context>
chip_gen: v5e
topology: v5e:2x2
jax: 0.10.0
libtpu: 0.0.40
codegen_flags: <defaults>
</compile_context>

<pallas_src>
import jax
import jax.numpy as jnp
from jax import lax
from jax.experimental import pallas as pl
from jax.experimental.pallas import tpu as pltpu

EPS = 1e-5
LANE = 128


def _mlp_kernel(x_ref, w1_ref, g1_ref, be1_ref, w2_ref, g2_ref, be2_ref, o_ref):
    inv_b = 1.0 / x_ref.shape[0]          # static at trace time

    # ---- fc1: x @ W1 (bias dropped: exactly cancelled by BN mean removal) ----
    h = jnp.dot(x_ref[...], w1_ref[...], preferred_element_type=jnp.float32)

    # ---- bn1 (training mode): mean once, reuse centered tensor for var & norm ----
    mu1 = jnp.sum(h, axis=0, keepdims=True) * inv_b
    hc = h - mu1
    var1 = jnp.sum(hc * hc, axis=0, keepdims=True) * inv_b
    # combine rsqrt and gamma on the [1, H] row before broadcasting to [B, H]
    h = hc * (lax.rsqrt(var1 + EPS) * g1_ref[...]) + be1_ref[...]

    # ---- ReLU ----
    h = jnp.maximum(h, 0.0)

    # ---- fc2: bf16 MXU inputs, f32 accumulation ----
    o = jnp.dot(h.astype(jnp.bfloat16), w2_ref[...],
                preferred_element_type=jnp.float32)

    # ---- bn2 ----
    mu2 = jnp.sum(o, axis=0, keepdims=True) * inv_b
    oc = o - mu2
    var2 = jnp.sum(oc * oc, axis=0, keepdims=True) * inv_b
    o_ref[...] = oc * (lax.rsqrt(var2 + EPS) * g2_ref[...]) + be2_ref[...]


def _round_up(n, m):
    return (n + m - 1) // m * m


def prepare_params(w1, b1, g1, be1, w2, b2, g2, be2):
    """One-time parameter prep: transpose to [in, out], pad feature dims to a
    multiple of 128 lanes, cast weights to bf16, make per-feature params [1, F].
    b1/b2 are intentionally dropped (cancelled by training-mode BatchNorm)."""
    del b1, b2
    hid, inp = w1.shape
    out = w2.shape[0]
    hp = _round_up(hid, LANE)
    op = _round_up(out, LANE)

    w1p = jnp.zeros((inp, hp), jnp.bfloat16).at[:, :hid].set(
        jnp.transpose(w1).astype(jnp.bfloat16))
    w2p = jnp.zeros((hp, op), jnp.bfloat16).at[:hid, :out].set(
        jnp.transpose(w2).astype(jnp.bfloat16))

    def pad_row(v, n):
        # zero padding => padded BN columns output exactly 0 (rsqrt(eps) * 0 * 0)
        return jnp.zeros((1, n), jnp.float32).at[0, :v.shape[0]].set(
            v.astype(jnp.float32))

    return (w1p, pad_row(g1, hp), pad_row(be1, hp),
            w2p, pad_row(g2, op), pad_row(be2, op))


def mlp_forward(x, prepared, out_dim):
    """x: [B, input_dim] float32. Returns [B, out_dim] float32."""
    w1p, g1p, be1p, w2p, g2p, be2p = prepared
    B = x.shape[0]
    op = w2p.shape[1]

    xb = x.astype(jnp.bfloat16)   # bf16 MXU inputs (halves activation DMA bytes)
    args = (xb, w1p, g1p, be1p, w2p, g2p, be2p)

    def full_spec(a):
        # Whole array resident in VMEM; shapes are tiny at these sizes.
        return pl.BlockSpec(a.shape, lambda i: (0,) * a.ndim)

    # TODO(synk): for realistic batch sizes, tile B with a "parallel" grid and a
    # two-phase cross-tile BN accumulator (per-feature sum/sumsq VMEM scratch,
    # finalize with pl.when) instead of keeping the whole batch resident.
    out = pl.pallas_call(
        _mlp_kernel,
        grid=(1,),
        in_specs=[full_spec(a) for a in args],
        out_specs=pl.BlockSpec((B, op), lambda i: (0, 0)),
        out_shape=jax.ShapeDtypeStruct((B, op), jnp.float32),
        compiler_params=pltpu.CompilerParams(
            dimension_semantics=("arbitrary",),
            vmem_limit_bytes=32 * 1024 * 1024),
    )(*args)
    return out[:, :out_dim]


def _reference_f32(x, w1, b1, g1, be1, w2, b2, g2, be2):
    """Exact torch training-mode semantics (f32 matmuls, biases included)."""
    x = x.astype(jnp.float32)
    h = x @ w1.T + b1
    h = (h - jnp.mean(h, 0)) / jnp.sqrt(jnp.var(h, 0) + EPS) * g1 + be1
    h = jnp.maximum(h, 0.0)
    o = h @ w2.T + b2
    return (o - jnp.mean(o, 0)) / jnp.sqrt(jnp.var(o, 0) + EPS) * g2 + be2


def _reference_bf16(x, w1, b1, g1, be1, w2, b2, g2, be2):
    """Same math as the kernel: bf16 matmul inputs, f32 accumulation / BN."""
    h = jnp.dot(x.astype(jnp.bfloat16), w1.T.astype(jnp.bfloat16),
                preferred_element_type=jnp.float32) + b1
    h = (h - jnp.mean(h, 0)) / jnp.sqrt(jnp.var(h, 0) + EPS) * g1 + be1
    h = jnp.maximum(h, 0.0)
    o = jnp.dot(h.astype(jnp.bfloat16), w2.T.astype(jnp.bfloat16),
                preferred_element_type=jnp.float32) + b2
    return (o - jnp.mean(o, 0)) / jnp.sqrt(jnp.var(o, 0) + EPS) * g2 + be2


if __name__ == "__main__":
    B, input_dim, hidden_dim, out_dim = 8, 16, 32, 16

    key = jax.random.PRNGKey(0)
    k = jax.random.split(key, 9)

    # torch.nn.Linear shapes: W is [out, in].
    w1 = jax.random.normal(k[0], (hidden_dim, input_dim), jnp.float32) * 0.1
    b1 = jax.random.normal(k[1], (hidden_dim,), jnp.float32) * 0.1
    g1 = 1.0 + 0.05 * jax.random.normal(k[2], (hidden_dim,), jnp.float32)
    be1 = 0.05 * jax.random.normal(k[3], (hidden_dim,), jnp.float32)

    w2 = jax.random.normal(k[4], (out_dim, hidden_dim), jnp.float32) * 0.1
    b2 = jax.random.normal(k[5], (out_dim,), jnp.float32) * 0.1
    g2 = 1.0 + 0.05 * jax.random.normal(k[6], (out_dim,), jnp.float32)
    be2 = 0.05 * jax.random.normal(k[7], (out_dim,), jnp.float32)

    x = jax.random.normal(k[8], (B, input_dim), jnp.float32)

    prepared = prepare_params(w1, b1, g1, be1, w2, b2, g2, be2)  # one-time prep
    out = mlp_forward(x, prepared, out_dim)
    out = jax.block_until_ready(out)
    assert out.shape == (B, out_dim)

    # Tight check against a reference that mirrors the kernel's bf16 matmul inputs.
    ref_bf16 = _reference_bf16(x, w1, b1, g1, be1, w2, b2, g2, be2)
    assert jnp.allclose(out, ref_bf16, atol=1e-2, rtol=1e-2), "mismatch vs bf16 reference"

    # Sanity check against exact f32 torch semantics (deviation bounded by bf16 cast).
    ref_f32 = _reference_f32(x, w1, b1, g1, be1, w2, b2, g2, be2)
    assert jnp.allclose(out, ref_f32, atol=2e-1, rtol=1e-1), "mismatch vs f32 reference"

    print("KERNEL_OK")
</pallas_src>

<mosaic_0001>
module attributes {stable_mosaic.version = 11 : i64} {
  func.func @_mlp_kernel(%arg0: i32, %arg1: memref<8x16xbf16, #tpu.memory_space<vmem>>, %arg2: memref<16x128xbf16, #tpu.memory_space<vmem>>, %arg3: memref<1x128xf32, #tpu.memory_space<vmem>>, %arg4: memref<1x128xf32, #tpu.memory_space<vmem>>, %arg5: memref<128x128xbf16, #tpu.memory_space<vmem>>, %arg6: memref<1x128xf32, #tpu.memory_space<vmem>>, %arg7: memref<1x128xf32, #tpu.memory_space<vmem>>, %arg8: memref<8x128xf32, #tpu.memory_space<vmem>>) attributes {dimension_semantics = [#tpu.dimension_semantics<arbitrary>], iteration_bounds = array<i64: 1>, scalar_prefetch = 0 : i64, scratch_operands = 0 : i64, tpu.core_type = #tpu.core_type<tc>, window_params = [{pipeline_mode = #tpu.pipeline_mode<synchronous>, transform_indices = @transform_0, window_bounds = array<i64: 8, 16>}, {pipeline_mode = #tpu.pipeline_mode<synchronous>, transform_indices = @transform_1, window_bounds = array<i64: 16, 128>}, {pipeline_mode = #tpu.pipeline_mode<synchronous>, transform_indices = @transform_2, window_bounds = array<i64: 1, 128>}, {pipeline_mode = #tpu.pipeline_mode<synchronous>, transform_indices = @transform_3, window_bounds = array<i64: 1, 128>}, {pipeline_mode = #tpu.pipeline_mode<synchronous>, transform_indices = @transform_4, window_bounds = array<i64: 128, 128>}, {pipeline_mode = #tpu.pipeline_mode<synchronous>, transform_indices = @transform_5, window_bounds = array<i64: 1, 128>}, {pipeline_mode = #tpu.pipeline_mode<synchronous>, transform_indices = @transform_6, window_bounds = array<i64: 1, 128>}, {pipeline_mode = #tpu.pipeline_mode<synchronous>, transform_indices = @transform_7, window_bounds = array<i64: 8, 128>}]} {
    %c0 = arith.constant 0 : index
    %c0_0 = arith.constant 0 : index
    %0 = vector.load %arg1[%c0, %c0_0] : memref<8x16xbf16, #tpu.memory_space<vmem>>, vector<8x16xbf16>
    %c0_1 = arith.constant 0 : index
    %c0_2 = arith.constant 0 : index
    %1 = vector.load %arg2[%c0_1, %c0_2] : memref<16x128xbf16, #tpu.memory_space<vmem>>, vector<16x128xbf16>
    %cst = arith.constant dense<0.000000e+00> : vector<8x128xf32>
    %2 = tpu.matmul %0, %1, %cst {dimension_numbers = #tpu.dot_dimension_numbers<[1], [0], [0], [1], [0, 0, 1, 1], [], []>} : vector<8x16xbf16>, vector<16x128xbf16>, vector<8x128xf32> -> vector<8x128xf32>
    %cst_3 = arith.constant dense<0.000000e+00> : vector<128xf32>
    %3 = vector.multi_reduction <add>, %2, %cst_3 [0] : vector<8x128xf32> to vector<128xf32>
    %4 = vector.shape_cast %3 : vector<128xf32> to vector<1x128xf32>
    %cst_4 = arith.constant 1.250000e-01 : f32
    %5 = vector.broadcast %cst_4 : f32 to vector<1x128xf32>
    %6 = arith.mulf %4, %5 : vector<1x128xf32>
    %7 = vector.broadcast %6 : vector<1x128xf32> to vector<8x128xf32>
    %8 = arith.subf %2, %7 : vector<8x128xf32>
    %9 = arith.mulf %8, %8 : vector<8x128xf32>
    %cst_5 = arith.constant dense<0.000000e+00> : vector<128xf32>
    %10 = vector.multi_reduction <add>, %9, %cst_5 [0] : vector<8x128xf32> to vector<128xf32>
    %11 = vector.shape_cast %10 : vector<128xf32> to vector<1x128xf32>
    %cst_6 = arith.constant 1.250000e-01 : f32
    %12 = vector.broadcast %cst_6 : f32 to vector<1x128xf32>
    %13 = arith.mulf %11, %12 : vector<1x128xf32>
    %cst_7 = arith.constant 9.99999974E-6 : f32
    %14 = vector.broadcast %cst_7 : f32 to vector<1x128xf32>
    %15 = arith.addf %13, %14 : vector<1x128xf32>
    %16 = math.rsqrt %15 : vector<1x128xf32>
    %c0_8 = arith.constant 0 : index
    %c0_9 = arith.constant 0 : index
    %17 = vector.load %arg3[%c0_8, %c0_9] : memref<1x128xf32, #tpu.memory_space<vmem>>, vector<1x128xf32>
    %18 = arith.mulf %16, %17 : vector<1x128xf32>
    %19 = vector.broadcast %18 : vector<1x128xf32> to vector<8x128xf32>
    %20 = arith.mulf %8, %19 : vector<8x128xf32>
    %c0_10 = arith.constant 0 : index
    %c0_11 = arith.constant 0 : index
    %21 = vector.load %arg4[%c0_10, %c0_11] : memref<1x128xf32, #tpu.memory_space<vmem>>, vector<1x128xf32>
    %22 = vector.broadcast %21 : vector<1x128xf32> to vector<8x128xf32>
    %23 = arith.addf %20, %22 : vector<8x128xf32>
    %cst_12 = arith.constant 0.000000e+00 : f32
    %24 = vector.broadcast %cst_12 : f32 to vector<8x128xf32>
    %25 = arith.maximumf %23, %24 : vector<8x128xf32>
    %26 = arith.truncf %25 : vector<8x128xf32> to vector<8x128xbf16>
    %c0_13 = arith.constant 0 : index
    %c0_14 = arith.constant 0 : index
    %27 = vector.load %arg5[%c0_13, %c0_14] : memref<128x128xbf16, #tpu.memory_space<vmem>>, vector<128x128xbf16>
    %cst_15 = arith.constant dense<0.000000e+00> : vector<8x128xf32>
    %28 = tpu.matmul %26, %27, %cst_15 {dimension_numbers = #tpu.dot_dimension_numbers<[1], [0], [0], [1], [0, 0, 1, 1], [], []>} : vector<8x128xbf16>, vector<128x128xbf16>, vector<8x128xf32> -> vector<8x128xf32>
    %cst_16 = arith.constant dense<0.000000e+00> : vector<128xf32>
    %29 = vector.multi_reduction <add>, %28, %cst_16 [0] : vector<8x128xf32> to vector<128xf32>
    %30 = vector.shape_cast %29 : vector<128xf32> to vector<1x128xf32>
    %cst_17 = arith.constant 1.250000e-01 : f32
    %31 = vector.broadcast %cst_17 : f32 to vector<1x128xf32>
    %32 = arith.mulf %30, %31 : vector<1x128xf32>
    %33 = vector.broadcast %32 : vector<1x128xf32> to vector<8x128xf32>
    %34 = arith.subf %28, %33 : vector<8x128xf32>
    %35 = arith.mulf %34, %34 : vector<8x128xf32>
    %cst_18 = arith.constant dense<0.000000e+00> : vector<128xf32>
    %36 = vector.multi_reduction <add>, %35, %cst_18 [0] : vector<8x128xf32> to vector<128xf32>
    %37 = vector.shape_cast %36 : vector<128xf32> to vector<1x128xf32>
    %cst_19 = arith.constant 1.250000e-01 : f32
    %38 = vector.broadcast %cst_19 : f32 to vector<1x128xf32>
    %39 = arith.mulf %37, %38 : vector<1x128xf32>
    %cst_20 = arith.constant 9.99999974E-6 : f32
    %40 = vector.broadcast %cst_20 : f32 to vector<1x128xf32>
    %41 = arith.addf %39, %40 : vector<1x128xf32>
    %42 = math.rsqrt %41 : vector<1x128xf32>
    %c0_21 = arith.constant 0 : index
    %c0_22 = arith.constant 0 : index
    %43 = vector.load %arg6[%c0_21, %c0_22] : memref<1x128xf32, #tpu.memory_space<vmem>>, vector<1x128xf32>
    %44 = arith.mulf %42, %43 : vector<1x128xf32>
    %45 = vector.broadcast %44 : vector<1x128xf32> to vector<8x128xf32>
    %46 = arith.mulf %34, %45 : vector<8x128xf32>
    %c0_23 = arith.constant 0 : index
    %c0_24 = arith.constant 0 : index
    %47 = vector.load %arg7[%c0_23, %c0_24] : memref<1x128xf32, #tpu.memory_space<vmem>>, vector<1x128xf32>
    %48 = vector.broadcast %47 : vector<1x128xf32> to vector<8x128xf32>
    %49 = arith.addf %46, %48 : vector<8x128xf32>
    %c0_25 = arith.constant 0 : index
    %c0_26 = arith.constant 0 : index
    %50 = vector.load %arg8[%c0_25, %c0_26] : memref<8x128xf32, #tpu.memory_space<vmem>>, vector<8x128xf32>
    tpu.vector_store %arg8[%c0_25, %c0_26], %49 {strides = array<i32>} : memref<8x128xf32, #tpu.memory_space<vmem>>, vector<8x128xf32>,
    return
  }
  func.func @transform_0(%arg0: i32) -> (i32, i32) {
    %c0_i32 = arith.constant 0 : i32
    %c0_i32_0 = arith.constant 0 : i32
    %c0_i32_1 = arith.constant 0 : i32
    return %c0_i32, %c0_i32_0 : i32, i32
  }
  func.func @transform_1(%arg0: i32) -> (i32, i32) {
    %c0_i32 = arith.constant 0 : i32
    %c0_i32_0 = arith.constant 0 : i32
    %c0_i32_1 = arith.constant 0 : i32
    return %c0_i32, %c0_i32_0 : i32, i32
  }
  func.func @transform_2(%arg0: i32) -> (i32, i32) {
    %c0_i32 = arith.constant 0 : i32
    %c0_i32_0 = arith.constant 0 : i32
    %c0_i32_1 = arith.constant 0 : i32
    return %c0_i32, %c0_i32_0 : i32, i32
  }
  func.func @transform_3(%arg0: i32) -> (i32, i32) {
    %c0_i32 = arith.constant 0 : i32
    %c0_i32_0 = arith.constant 0 : i32
    %c0_i32_1 = arith.constant 0 : i32
    return %c0_i32, %c0_i32_0 : i32, i32
  }
  func.func @transform_4(%arg0: i32) -> (i32, i32) {
    %c0_i32 = arith.constant 0 : i32
    %c0_i32_0 = arith.constant 0 : i32
    %c0_i32_1 = arith.constant 0 : i32
    return %c0_i32, %c0_i32_0 : i32, i32
  }
  func.func @transform_5(%arg0: i32) -> (i32, i32) {
    %c0_i32 = arith.constant 0 : i32
    %c0_i32_0 = arith.constant 0 : i32
    %c0_i32_1 = arith.constant 0 : i32
    return %c0_i32, %c0_i32_0 : i32, i32
  }
  func.func @transform_6(%arg0: i32) -> (i32, i32) {
    %c0_i32 = arith.constant 0 : i32
    %c0_i32_0 = arith.constant 0 : i32
    %c0_i32_1 = arith.constant 0 : i32
    return %c0_i32, %c0_i32_0 : i32, i32
  }
  func.func @transform_7(%arg0: i32) -> (i32, i32) {
    %c0_i32 = arith.constant 0 : i32
    %c0_i32_0 = arith.constant 0 : i32
    %c0_i32_1 = arith.constant 0 : i32
    return %c0_i32, %c0_i32_0 : i32, i32
  }
}

</mosaic_0001>

<llo_original>
// kernel: tpu_custom_call.1
$region0: #{tpu_custom_call.1}
  #allocation0 [shape = 'u32[]', space=smem, size = 0x4, offset = 0x4, fixed_abs, tag = 'smem constant byte address 0x4 - core index']
  #allocation1 [shape = 'u32[72,128]{1,0:T(1,128)}', space=vmem, size = 0x9000, scoped, tag = 'internal scratch']
  %s0 = inlined_call_operand.hbm [shape: bf16[8,16], index: 0, kind: input, shape index: {}]
  %s1 = inlined_call_operand.hbm [shape: bf16[16,128], index: 1, kind: input, shape index: {}]
  %s2 = inlined_call_operand.vmem [shape: f32[1,128], index: 2, kind: input, shape index: {}]
  %s3 = inlined_call_operand.vmem [shape: f32[1,128], index: 3, kind: input, shape index: {}]
  %s4 = inlined_call_operand.hbm [shape: bf16[128,128], index: 4, kind: input, shape index: {}]
  %s5 = inlined_call_operand.vmem [shape: f32[1,128], index: 5, kind: input, shape index: {}]
  %s6 = inlined_call_operand.vmem [shape: f32[1,128], index: 6, kind: input, shape index: {}]
  %s7 = inlined_call_operand.hbm [shape: f32[8,128], index: 7, kind: output, shape index: {}]
  %s8 = sld [smem:[#allocation0]]
  $region50: #{tpu_custom_call.1} parent=0
    _
  %s10 = ssub.s32 1, %s8
  %s11 = scalar_select 0, %s10, %s8
  $region1: #{tpu_custom_call.1} parent=0
    #allocation2 [shape = 'u8[2048]{0}', space=vmem, size = 0x800, scoped, tag = 'input window, operand 0, single buffered']
    #allocation3 [shape = 's32[1]{0}', space=sflag, size = 0x4, scoped, tag = 'scoped memory for tpu_custom_call.1']
    #allocation4 [shape = 's32[1]{0}', space=sflag, size = 0x4, scoped, tag = 'scoped memory for tpu_custom_call.1']
    #allocation5 [shape = 'u8[4096]{0}', space=vmem, size = 0x1000, scoped, tag = 'input window, operand 1, single buffered']
    #allocation6 [shape = 's32[1]{0}', space=sflag, size = 0x4, scoped, tag = 'scoped memory for tpu_custom_call.1']
    #allocation7 [shape = 'u8[32768]{0}', space=vmem, size = 0x8000, scoped, tag = 'input window, operand 4, single buffered']
    #allocation8 [shape = 'u8[4096]{0}', space=vmem, size = 0x1000, scoped, tag = 'output window, operand 0, single buffered']
    %12 = vsyncpa [#allocation3], 0
    %13 = vsyncpa [#allocation6], 0
    %14 = vsyncpa [#allocation4], 0
    // Predicated region
    $region2: #{tpu_custom_call.1} parent=1 // pred_check
      _
    $region3: #{tpu_custom_call.1} parent=1 // pred_check_branch
      %16 = sbr.rel (0) target = $region5
    $region4: #{tpu_custom_call.1} parent=1 // pred_region
      %18 = vsyncadd [#allocation3], 0
      %s20 = sshll.u32 %s0, 4
      %s21 = int_to_ptr.hbm [resolvable:$true] %s20
      %s22 = sshll.u32 [#allocation2], 4
      %s23 = int_to_ptr.vmem [resolvable:$true] %s22
      %25 = dma.hbm_to_vmem [thread:$0]  %s21, 64, %s23, [#allocation3]
    $region5: #{tpu_custom_call.1} parent=1 // pred_fallthru
      _
    // Predicated region
    $region6: #{tpu_custom_call.1} parent=1 // pred_check
      _
    $region7: #{tpu_custom_call.1} parent=1 // pred_check_branch
      %27 = sbr.rel (0) target = $region9
    $region8: #{tpu_custom_call.1} parent=1 // pred_region
      %29 = vsyncadd [#allocation6], 0
      %s30 = sshll.u32 %s1, 4
      %s31 = int_to_ptr.hbm [resolvable:$true] %s30
      %s32 = sshll.u32 [#allocation5], 4
      %s33 = int_to_ptr.vmem [resolvable:$true] %s32
      %38 = dma.hbm_to_vmem [thread:$0]  %s31, 128, %s33, [#allocation6], 64, 64, 4
    $region9: #{tpu_custom_call.1} parent=1 // pred_fallthru
      _
    // Predicated region
    $region10: #{tpu_custom_call.1} parent=1 // pred_check
      _
    $region11: #{tpu_custom_call.1} parent=1 // pred_check_branch
      %40 = sbr.rel (0) target = $region13
    $region12: #{tpu_custom_call.1} parent=1 // pred_region
      _
    $region13: #{tpu_custom_call.1} parent=1 // pred_fallthru
      _
    // Predicated region
    $region14: #{tpu_custom_call.1} parent=1 // pred_check
      _
    $region15: #{tpu_custom_call.1} parent=1 // pred_check_branch
      %42 = sbr.rel (0) target = $region17
    $region16: #{tpu_custom_call.1} parent=1 // pred_region
      _
    $region17: #{tpu_custom_call.1} parent=1 // pred_fallthru
      _
    // Predicated region
    $region18: #{tpu_custom_call.1} parent=1 // pred_check
      _
    $region19: #{tpu_custom_call.1} parent=1 // pred_check_branch
      %44 = sbr.rel (0) target = $region21
    $region20: #{tpu_custom_call.1} parent=1 // pred_region
      %46 = vsyncadd [#allocation6], 0
      %s47 = sshll.u32 %s4, 4
      %s48 = int_to_ptr.hbm [resolvable:$true] %s47
      %s49 = sshll.u32 [#allocation7], 4
      %s50 = int_to_ptr.vmem [resolvable:$true] %s49
      %55 = dma.hbm_to_vmem [thread:$0]  %s48, 1024, %s50, [#allocation6], 64, 64, 4
    $region21: #{tpu_custom_call.1} parent=1 // pred_fallthru
      _
    // Predicated region
    $region22: #{tpu_custom_call.1} parent=1 // pred_check
      _
    $region23: #{tpu_custom_call.1} parent=1 // pred_check_branch
      %57 = sbr.rel (0) target = $region25
    $region24: #{tpu_custom_call.1} parent=1 // pred_region
      _
    $region25: #{tpu_custom_call.1} parent=1 // pred_fallthru
      _
    // Predicated region
    $region26: #{tpu_custom_call.1} parent=1 // pred_check
      _
    $region27: #{tpu_custom_call.1} parent=1 // pred_check_branch
      %59 = sbr.rel (0) target = $region29
    $region28: #{tpu_custom_call.1} parent=1 // pred_region
      _
    $region29: #{tpu_custom_call.1} parent=1 // pred_fallthru
      _
    // Predicated region
    $region30: #{tpu_custom_call.1} parent=1 // pred_check
      _
    $region31: #{tpu_custom_call.1} parent=1 // pred_check_branch
      %61 = sbr.rel (0) target = $region33
    $region32: #{tpu_custom_call.1} parent=1 // pred_region
      %63 = dma.done [#allocation3], 64
    $region33: #{tpu_custom_call.1} parent=1 // pred_fallthru
      _
    // Predicated region
    $region34: #{tpu_custom_call.1} parent=1 // pred_check
      _
    $region35: #{tpu_custom_call.1} parent=1 // pred_check_branch
      %65 = sbr.rel (0) target = $region37
    $region36: #{tpu_custom_call.1} parent=1 // pred_region
      %67 = dma.done [#allocation6], 128
    $region37: #{tpu_custom_call.1} parent=1 // pred_fallthru
      _
    // Predicated region
    $region38: #{tpu_custom_call.1} parent=1 // pred_check
      _
    $region39: #{tpu_custom_call.1} parent=1 // pred_check_branch
      %69 = sbr.rel (0) target = $region41
    $region40: #{tpu_custom_call.1} parent=1 // pred_region
      %71 = dma.done [#allocation6], 1024
    $region41: #{tpu_custom_call.1} parent=1 // pred_fallthru
      _
    %v73 = vld [vmem:[#allocation2] sm:$0xf]
    %v74 = vld [vmem:[#allocation5] sm:$0xf]
    %v75 = vld [vmem:[#allocation5 + $0x4] sm:$0xf]
    %v78 = vunpack.c.l.b16 %v74
    %v79 = vunpack.c.l.b16 %v75
    %v80 = vpack.c.b16 %v79, %v78
    %vm82 = vcmask 130048
    %v84 = vsel %vm82, %v73, 0
    %86 = vmatpush.bf16.msra.mxu0 0
    %87 = vmatpush.bf16.msra.mxu0 0
    %88 = vmatpush.bf16.msra.mxu0 0
    %89 = vmatpush.bf16.msra.mxu0 0
    %90 = vmatpush.bf16.msra.mxu0 0
    %91 = vmatpush.bf16.msra.mxu0 0
    %92 = vmatpush.bf16.msra.mxu0 0
    %93 = vmatpush.bf16.msra.mxu0 %v80
    %94 = vmatmul.bf16.gmra.mxu0 %v84
    %v95 = vpop.f32.mrf.mxu0
    %v96 = vadd.f32 0.0, %v95
    %v97 = vpop.f32.mrf.mxu0
    %98 = vdwg.mxu0
    %v99 = vrot.slane %v96, 4
    %v100 = vadd.f32 %v96, %v99
    %v101 = vrot.slane %v100, 2
    %v102 = vadd.f32 %v100, %v101
    %v103 = vrot.slane %v102, 1
    %v104 = vadd.f32 %v102, %v103
    %v105 = vmul.f32 %v104, 0.125
    %v106 = vsub.f32 %v96, %v105
    %v107 = vmul.f32 %v106, %v106
    %v108 = vrot.slane %v107, 4
    %v109 = vadd.f32 %v107, %v108
    %v110 = vrot.slane %v109, 2
    %v111 = vadd.f32 %v109, %v110
    %v112 = vrot.slane %v111, 1
    %v113 = vadd.f32 %v111, %v112
    %v114 = vmul.f32 %v113, 0.125
    %v115 = vadd.f32 %v114, 1e-05
    %v116 = vrsqrt.pop %v115
    %v117 = vmul.f32 %v116, %v115
    %v118 = vmul.f32 %v117, %v116
    %v119 = vmul.f32 0.5, %v118
    %v120 = vsub.f32 1.5, %v119
    %v121 = vmul.f32 %v116, %v120
    %vm122 = vweird.f32 %v115
    %vm123 = vweird.f32 %v116
    %vm124 = vmor %vm122, %vm123
    %v125 = vsel %vm124, %v116, %v121
    %v126 = vld [vmem:[%s2] sm:$0x1]
    %v127 = vmul.f32 %v125, %v126
    %v128 = vperm.slane %v127, 0
    %v129 = vmul.f32 %v106, %v128
    %v130 = vld [vmem:[%s3] sm:$0x1]
    %v132 = vperm.slane %v130, 0
    %v134 = vadd.f32 %v129, %v132
    %v135 = vmax.f32 %v134, 0.0
    %v136 = vpack.c.bf16 %v135, %v135
    %v137 = vld [vmem:[#allocation7] sm:$0xf]
    %v138 = vld [vmem:[#allocation7 + $0x4] sm:$0xf]
    %v139 = vld [vmem:[#allocation7 + $0x8] sm:$0xf]
    %v140 = vld [vmem:[#allocation7 + $0xc] sm:$0xf]
    %v141 = vld [vmem:[#allocation7 + $0x10] sm:$0xf]
    %v142 = vld [vmem:[#allocation7 + $0x14] sm:$0xf]
    %v143 = vld [vmem:[#allocation7 + $0x18] sm:$0xf]
    %v144 = vld [vmem:[#allocation7 + $0x1c] sm:$0xf]
    %v145 = vld [vmem:[#allocation7 + $0x20] sm:$0xf]
    %v146 = vld [vmem:[#allocation7 + $0x24] sm:$0xf]
    %v147 = vld [vmem:[#allocation7 + $0x28] sm:$0xf]
    %v148 = vld [vmem:[#allocation7 + $0x2c] sm:$0xf]
    %v149 = vld [vmem:[#allocation7 + $0x30] sm:$0xf]
    %v150 = vld [vmem:[#allocation7 + $0x34] sm:$0xf]
    %v151 = vld [vmem:[#allocation7 + $0x38] sm:$0xf]
    %v152 = vld [vmem:[#allocation7 + $0x3c] sm:$0xf]
    %v169 = vunpack.c.l.b16 %v137
    %v170 = vunpack.c.l.b16 %v138
    %v171 = vunpack.c.l.b16 %v139
    %v172 = vunpack.c.l.b16 %v140
    %v173 = vunpack.c.l.b16 %v141
    %v174 = vunpack.c.l.b16 %v142
    %v175 = vunpack.c.l.b16 %v143
    %v176 = vunpack.c.l.b16 %v144
    %v177 = vunpack.c.l.b16 %v145
    %v178 = vunpack.c.l.b16 %v146
    %v179 = vunpack.c.l.b16 %v147
    %v180 = vunpack.c.l.b16 %v148
    %v181 = vunpack.c.l.b16 %v149
    %v182 = vunpack.c.l.b16 %v150
    %v183 = vunpack.c.l.b16 %v151
    %v184 = vunpack.c.l.b16 %v152
    %v185 = vpack.c.b16 %v170, %v169
    %v186 = vpack.c.b16 %v172, %v171
    %v187 = vpack.c.b16 %v174, %v173
    %v188 = vpack.c.b16 %v176, %v175
    %v189 = vpack.c.b16 %v178, %v177
    %v190 = vpack.c.b16 %v180, %v179
    %v191 = vpack.c.b16 %v182, %v181
    %v192 = vpack.c.b16 %v184, %v183
    %201 = vmatpush.bf16.msra.mxu0 %v192
    %202 = vmatpush.bf16.msra.mxu0 %v191
    %203 = vmatpush.bf16.msra.mxu0 %v190
    %204 = vmatpush.bf16.msra.mxu0 %v189
    %205 = vmatpush.bf16.msra.mxu0 %v188
    %206 = vmatpush.bf16.msra.mxu0 %v187
    %207 = vmatpush.bf16.msra.mxu0 %v186
    %208 = vmatpush.bf16.msra.mxu0 %v185
    %209 = vmatmul.bf16.gmra.mxu0 %v136
    %v210 = vpop.f32.mrf.mxu0
    %v211 = vadd.f32 0.0, %v210
    %v212 = vpop.f32.mrf.mxu0
    %213 = vdwg.mxu0
    %v214 = vrot.slane %v211, 4
    %v215 = vadd.f32 %v211, %v214
    %v216 = vrot.slane %v215, 2
    %v217 = vadd.f32 %v215, %v216
    %v218 = vrot.slane %v217, 1
    %v219 = vadd.f32 %v217, %v218
    %v220 = vmul.f32 %v219, 0.125
    %v221 = vsub.f32 %v211, %v220
    %v222 = vmul.f32 %v221, %v221
    %v223 = vrot.slane %v222, 4
    %v224 = vadd.f32 %v222, %v223
    %v225 = vrot.slane %v224, 2
    %v226 = vadd.f32 %v224, %v225
    %v227 = vrot.slane %v226, 1
    %v228 = vadd.f32 %v226, %v227
    %v229 = vmul.f32 %v228, 0.125
    %v230 = vadd.f32 %v229, 1e-05
    %v231 = vrsqrt.pop %v230
    %v232 = vmul.f32 %v231, %v230
    %v233 = vmul.f32 %v232, %v231
    %v234 = vmul.f32 0.5, %v233
    %v235 = vsub.f32 1.5, %v234
    %v236 = vmul.f32 %v231, %v235
    %vm237 = vweird.f32 %v230
    %vm238 = vweird.f32 %v231
    %vm239 = vmor %vm237, %vm238
    %v240 = vsel %vm239, %v231, %v236
    %v241 = vld [vmem:[%s5] sm:$0x1]
    %v242 = vmul.f32 %v240, %v241
    %v243 = vperm.slane %v242, 0
    %v244 = vmul.f32 %v221, %v243
    %v245 = vld [vmem:[%s6] sm:$0x1]
    %v247 = vperm.slane %v245, 0
    %v249 = vadd.f32 %v244, %v247
    %250 = vst [vmem:[#allocation8] sm:$0xff] %v249
    // Predicated region
    $region42: #{tpu_custom_call.1} parent=1 // pred_check
      _
    $region43: #{tpu_custom_call.1} parent=1 // pred_check_branch
      %252 = sbr.rel (0) target = $region45
    $region44: #{tpu_custom_call.1} parent=1 // pred_region
      %254 = vsyncadd [#allocation4], 0
      %s256 = sshll.u32 [#allocation8], 4
      %s257 = int_to_ptr.vmem [resolvable:$true] %s256
      %s258 = sshll.u32 %s7, 4
      %s259 = int_to_ptr.hbm [resolvable:$true] %s258
      %261 = dma.vmem_to_hbm [thread:$0]  %s257, 128, %s259, [#allocation4]
    $region45: #{tpu_custom_call.1} parent=1 // pred_fallthru
      _
    // Predicated region
    $region46: #{tpu_custom_call.1} parent=1 // pred_check
      _
    $region47: #{tpu_custom_call.1} parent=1 // pred_check_branch
      %263 = sbr.rel (0) target = $region49
    $region48: #{tpu_custom_call.1} parent=1 // pred_region
      %265 = dma.done [#allocation4], 128
    $region49: #{tpu_custom_call.1} parent=1 // pred_fallthru
      _
    %266 = vsyncpa [#allocation3], 1
    %267 = vsyncpa [#allocation6], 1
    %268 = vsyncpa [#allocation4], 1

</llo_original>
